<compile_context>
chip_gen: v7x
topology: tpu7x:2x2x1
jax: 0.10.0
libtpu: 0.0.40
codegen_flags: <defaults>
</compile_context>

<pallas_src>
import jax
import jax.numpy as jnp
from jax.experimental import pallas as pl
from jax.experimental.pallas import tpu as pltpu

K_IN, HID, N_OUT = 100, 128, 3   # module dims: Linear(100,128), Linear(128,3)
TILE_CAP = 4096                  # safe on v5e/v6e/v7x within 32 MiB scoped VMEM


def _round_up(v, m):
    return -(-v // m) * m


def _mlp_kernel(x_ref, w1_ref, b1_ref, w2_ref, b2_ref, o_ref):
    # fc1 + ReLU  (MXU matmul, f32 accumulation)
    h = jnp.dot(x_ref[...], w1_ref[...], preferred_element_type=jnp.float32)
    h = jnp.maximum(h + b1_ref[...], 0.0)               # (tile_b,128)+(1,128)
    # fc2 + sigmoid (true 3-wide output; HBM destination is contiguous)
    z = jnp.dot(h, w2_ref[...], preferred_element_type=jnp.float32)
    o_ref[...] = jax.nn.sigmoid(z + b2_ref[...]).astype(o_ref.dtype)


@jax.jit
def test_image_forward(x, w1, b1, w2, b2):
    """x: (B, 100) f32 -> (B, 3) f32.  w1:(100,128) b1:(1,128) w2:(128,3) b2:(1,3)."""
    B = x.shape[0]

    # Tile the batch.  Small B -> one >=8-row tile; B>16 -> aim for an even
    # grid split (both v7x TensorCores busy) up to the cap; large B -> 4096-row
    # tiles (per-step overhead <15% of step time, VMEM use well under budget).
    if B <= 16:
        tile_b = max(8, _round_up(B, 8))
    else:
        tile_b = min(TILE_CAP, _round_up(-(-B // 2), 8))
    grid = (pl.cdiv(B, tile_b),)

    flops = 2 * B * (K_IN * HID + HID * N_OUT)
    bytes_accessed = 4 * (B * K_IN + B * N_OUT
                          + K_IN * HID + HID + HID * N_OUT + N_OUT)

    return pl.pallas_call(
        _mlp_kernel,
        out_shape=jax.ShapeDtypeStruct((B, N_OUT), jnp.float32),
        grid=grid,
        in_specs=[
            pl.BlockSpec((tile_b, K_IN), lambda i: (i, 0)),   # x: tiled over batch
            pl.BlockSpec((K_IN, HID),    lambda i: (0, 0)),   # w1: VMEM-resident
            pl.BlockSpec((1, HID),       lambda i: (0, 0)),   # b1
            pl.BlockSpec((HID, N_OUT),   lambda i: (0, 0)),   # w2
            pl.BlockSpec((1, N_OUT),     lambda i: (0, 0)),   # b2
        ],
        out_specs=pl.BlockSpec((tile_b, N_OUT), lambda i: (i, 0)),
        compiler_params=pltpu.CompilerParams(
            dimension_semantics=("parallel",),     # shard batch across TCs (v7x)
            vmem_limit_bytes=32 * 1024 * 1024,     # safe on v7x's 64 MiB VMEM
        ),
        cost_estimate=pl.CostEstimate(
            flops=flops,
            transcendentals=B * N_OUT,             # sigmoid exp
            bytes_accessed=bytes_accessed,
        ),
    )(x, w1, b1, w2, b2)


def init_params(key):
    """Deterministic init matching the PyTorch module's shapes (stored (in,out));
    Kaiming-uniform-like bounds.  Biases returned as (1, out) rows."""
    k1, k2, k3, k4 = jax.random.split(key, 4)
    bound1 = 1.0 / jnp.sqrt(100.0)
    bound2 = 1.0 / jnp.sqrt(128.0)
    w1 = jax.random.uniform(k1, (K_IN, HID), jnp.float32, -bound1, bound1)
    b1 = jax.random.uniform(k2, (1, HID), jnp.float32, -bound1, bound1)
    w2 = jax.random.uniform(k3, (HID, N_OUT), jnp.float32, -bound2, bound2)
    b2 = jax.random.uniform(k4, (1, N_OUT), jnp.float32, -bound2, bound2)
    return w1, b1, w2, b2


def reference(x, w1, b1, w2, b2):
    h = jnp.maximum(x @ w1 + b1, 0.0)
    return jax.nn.sigmoid(h @ w2 + b2)


if __name__ == "__main__":
    key = jax.random.PRNGKey(0)
    k_x, k_p = jax.random.split(key)
    w1, b1, w2, b2 = init_params(k_p)

    # Small batch (single tile, grid=1).
    B = 8
    x = jax.random.normal(k_x, (B, K_IN), jnp.float32)
    out = jax.block_until_ready(test_image_forward(x, w1, b1, w2, b2))
    ref = reference(x, w1, b1, w2, b2)
    assert out.shape == (B, N_OUT), out.shape
    assert jnp.allclose(out, ref, atol=1e-5, rtol=1e-5), "mismatch vs reference"

    # Larger batch: even 2-tile grid (both v7x TCs busy), divides evenly.
    xb = jax.random.normal(k_x, (2000, K_IN), jnp.float32)
    outb = jax.block_until_ready(test_image_forward(xb, w1, b1, w2, b2))
    refb = reference(xb, w1, b1, w2, b2)
    assert outb.shape == (2000, N_OUT)
    assert jnp.allclose(outb, refb, atol=1e-5, rtol=1e-5), "mismatch (large B)"

    # Ragged batch: grid=2 with a masked tail block (no batch zero-padding).
    xr = jax.random.normal(k_x, (777, K_IN), jnp.float32)
    outr = jax.block_until_ready(test_image_forward(xr, w1, b1, w2, b2))
    refr = reference(xr, w1, b1, w2, b2)
    assert outr.shape == (777, N_OUT)
    assert jnp.allclose(outr, refr, atol=1e-5, rtol=1e-5), "mismatch (ragged B)"

    print("KERNEL_OK")
</pallas_src>

<mosaic_0001>
module attributes {stable_mosaic.version = 11 : i64} {
  func.func @_mlp_kernel(%arg0: i32, %arg1: memref<8x100xf32, #tpu.memory_space<vmem>>, %arg2: memref<100x128xf32, #tpu.memory_space<vmem>>, %arg3: memref<1x128xf32, #tpu.memory_space<vmem>>, %arg4: memref<128x3xf32, #tpu.memory_space<vmem>>, %arg5: memref<1x3xf32, #tpu.memory_space<vmem>>, %arg6: memref<8x3xf32, #tpu.memory_space<vmem>>) attributes {dimension_semantics = [#tpu.dimension_semantics<parallel>], iteration_bounds = array<i64: 1>, scalar_prefetch = 0 : i64, scratch_operands = 0 : i64, tpu.core_type = #tpu.core_type<tc>, window_params = [{transform_indices = @transform_0, window_bounds = array<i64: 8, 100>}, {pipeline_mode = #tpu.pipeline_mode<synchronous>, transform_indices = @transform_1, window_bounds = array<i64: 100, 128>}, {pipeline_mode = #tpu.pipeline_mode<synchronous>, transform_indices = @transform_2, window_bounds = array<i64: 1, 128>}, {pipeline_mode = #tpu.pipeline_mode<synchronous>, transform_indices = @transform_3, window_bounds = array<i64: 128, 3>}, {pipeline_mode = #tpu.pipeline_mode<synchronous>, transform_indices = @transform_4, window_bounds = array<i64: 1, 3>}, {transform_indices = @transform_5, window_bounds = array<i64: 8, 3>}]} {
    %c0 = arith.constant 0 : index
    %c0_0 = arith.constant 0 : index
    %0 = vector.load %arg1[%c0, %c0_0] : memref<8x100xf32, #tpu.memory_space<vmem>>, vector<8x100xf32>
    %c0_1 = arith.constant 0 : index
    %c0_2 = arith.constant 0 : index
    %1 = vector.load %arg2[%c0_1, %c0_2] : memref<100x128xf32, #tpu.memory_space<vmem>>, vector<100x128xf32>
    %cst = arith.constant dense<0.000000e+00> : vector<8x128xf32>
    %2 = tpu.matmul %0, %1, %cst {dimension_numbers = #tpu.dot_dimension_numbers<[1], [0], [0], [1], [0, 0, 1, 1], [], []>} : vector<8x100xf32>, vector<100x128xf32>, vector<8x128xf32> -> vector<8x128xf32>
    %c0_3 = arith.constant 0 : index
    %c0_4 = arith.constant 0 : index
    %3 = vector.load %arg3[%c0_3, %c0_4] : memref<1x128xf32, #tpu.memory_space<vmem>>, vector<1x128xf32>
    %4 = vector.broadcast %3 : vector<1x128xf32> to vector<8x128xf32>
    %5 = arith.addf %2, %4 : vector<8x128xf32>
    %cst_5 = arith.constant 0.000000e+00 : f32
    %6 = vector.broadcast %cst_5 : f32 to vector<8x128xf32>
    %7 = arith.maximumf %5, %6 : vector<8x128xf32>
    %c0_6 = arith.constant 0 : index
    %c0_7 = arith.constant 0 : index
    %8 = vector.load %arg4[%c0_6, %c0_7] : memref<128x3xf32, #tpu.memory_space<vmem>>, vector<128x3xf32>
    %cst_8 = arith.constant dense<0.000000e+00> : vector<8x3xf32>
    %9 = tpu.matmul %7, %8, %cst_8 {dimension_numbers = #tpu.dot_dimension_numbers<[1], [0], [0], [1], [0, 0, 1, 1], [], []>} : vector<8x128xf32>, vector<128x3xf32>, vector<8x3xf32> -> vector<8x3xf32>
    %c0_9 = arith.constant 0 : index
    %c0_10 = arith.constant 0 : index
    %10 = vector.load %arg5[%c0_9, %c0_10] : memref<1x3xf32, #tpu.memory_space<vmem>>, vector<1x3xf32>
    %11 = vector.broadcast %10 : vector<1x3xf32> to vector<8x3xf32>
    %12 = arith.addf %9, %11 : vector<8x3xf32>
    %13 = arith.negf %12 : vector<8x3xf32>
    %14 = math.exp %13 : vector<8x3xf32>
    %cst_11 = arith.constant 1.000000e+00 : f32
    %15 = vector.broadcast %cst_11 : f32 to vector<8x3xf32>
    %16 = arith.addf %15, %14 : vector<8x3xf32>
    %17 = arith.divf %15, %16 : vector<8x3xf32>
    %c0_12 = arith.constant 0 : index
    %c0_13 = arith.constant 0 : index
    %18 = vector.load %arg6[%c0_12, %c0_13] : memref<8x3xf32, #tpu.memory_space<vmem>>, vector<8x3xf32>
    tpu.vector_store %arg6[%c0_12, %c0_13], %17 {strides = array<i32>} : memref<8x3xf32, #tpu.memory_space<vmem>>, vector<8x3xf32>,
    return
  }
  func.func @transform_0(%arg0: i32) -> (i32, i32) {
    %c0_i32 = arith.constant 0 : i32
    %c0_i32_0 = arith.constant 0 : i32
    return %arg0, %c0_i32 : i32, i32
  }
  func.func @transform_1(%arg0: i32) -> (i32, i32) {
    %c0_i32 = arith.constant 0 : i32
    %c0_i32_0 = arith.constant 0 : i32
    %c0_i32_1 = arith.constant 0 : i32
    return %c0_i32, %c0_i32_0 : i32, i32
  }
  func.func @transform_2(%arg0: i32) -> (i32, i32) {
    %c0_i32 = arith.constant 0 : i32
    %c0_i32_0 = arith.constant 0 : i32
    %c0_i32_1 = arith.constant 0 : i32
    return %c0_i32, %c0_i32_0 : i32, i32
  }
  func.func @transform_3(%arg0: i32) -> (i32, i32) {
    %c0_i32 = arith.constant 0 : i32
    %c0_i32_0 = arith.constant 0 : i32
    %c0_i32_1 = arith.constant 0 : i32
    return %c0_i32, %c0_i32_0 : i32, i32
  }
  func.func @transform_4(%arg0: i32) -> (i32, i32) {
    %c0_i32 = arith.constant 0 : i32
    %c0_i32_0 = arith.constant 0 : i32
    %c0_i32_1 = arith.constant 0 : i32
    return %c0_i32, %c0_i32_0 : i32, i32
  }
  func.func @transform_5(%arg0: i32) -> (i32, i32) {
    %c0_i32 = arith.constant 0 : i32
    %c0_i32_0 = arith.constant 0 : i32
    return %arg0, %c0_i32 : i32, i32
  }
}

</mosaic_0001>

<llo_original>
// kernel: test_image_forward.1
$region0: #{test_image_forward.1}
  #allocation0 [shape = 'u32[]', space=smem, size = 0x4, offset = 0x4, fixed_abs, tag = 'smem constant byte address 0x4 - core index']
  #allocation1 [shape = 'u32[144,128]{1,0:T(1,128)}', space=vmem, size = 0x12000, scoped, tag = 'internal scratch']
  %s0 = inlined_call_operand.vmem [shape: f32[8,100], index: 0, kind: input, shape index: {}]
  %s1 = inlined_call_operand.vmem [shape: f32[100,128], index: 1, kind: input, shape index: {}]
  %s2 = inlined_call_operand.vmem [shape: f32[1,128], index: 2, kind: input, shape index: {}]
  %s3 = inlined_call_operand.vmem [shape: f32[128,3], index: 3, kind: input, shape index: {}]
  %s4 = inlined_call_operand.vmem [shape: f32[1,3], index: 4, kind: input, shape index: {}]
  %s5 = inlined_call_operand.vmem [shape: f32[8,3], index: 5, kind: output, shape index: {}]
  %s6 = sld [smem:[#allocation0]]
  $region30: #{test_image_forward.1} parent=0
    _
  %s8 = ssub.s32 1, %s6
  %s9 = scalar_select 0, %s8, %s6
  // Predicated region
  $region2: #{test_image_forward.1} parent=0 // pred_check
    _
  $region3: #{test_image_forward.1} parent=0 // pred_check_branch
    %11 = sbr.rel (0) target = $region5
  $region4: #{test_image_forward.1} parent=0 // pred_region
    _
  $region5: #{test_image_forward.1} parent=0 // pred_fallthru
    _
  // Predicated region
  $region6: #{test_image_forward.1} parent=0 // pred_check
    _
  $region7: #{test_image_forward.1} parent=0 // pred_check_branch
    %13 = sbr.rel (0) target = $region9
  $region8: #{test_image_forward.1} parent=0 // pred_region
    _
  $region9: #{test_image_forward.1} parent=0 // pred_fallthru
    _
  // Predicated region
  $region10: #{test_image_forward.1} parent=0 // pred_check
    _
  $region11: #{test_image_forward.1} parent=0 // pred_check_branch
    %15 = sbr.rel (0) target = $region13
  $region12: #{test_image_forward.1} parent=0 // pred_region
    _
  $region13: #{test_image_forward.1} parent=0 // pred_fallthru
    _
  // Predicated region
  $region14: #{test_image_forward.1} parent=0 // pred_check
    _
  $region15: #{test_image_forward.1} parent=0 // pred_check_branch
    %17 = sbr.rel (0) target = $region17
  $region16: #{test_image_forward.1} parent=0 // pred_region
    _
  $region17: #{test_image_forward.1} parent=0 // pred_fallthru
    _
  // Predicated region
  $region18: #{test_image_forward.1} parent=0 // pred_check
    _
  $region19: #{test_image_forward.1} parent=0 // pred_check_branch
    %19 = sbr.rel (0) target = $region21
  $region20: #{test_image_forward.1} parent=0 // pred_region
    _
  $region21: #{test_image_forward.1} parent=0 // pred_fallthru
    _
  %v20 = vld [vmem:[%s0] sm:$0xff]
  %v21 = vld [vmem:[%s1] sm:$0xff]
  %v22 = vld [vmem:[%s1 + $0x8] sm:$0xff]
  %v23 = vld [vmem:[%s1 + $0x10] sm:$0xff]
  %v24 = vld [vmem:[%s1 + $0x18] sm:$0xff]
  %v25 = vld [vmem:[%s1 + $0x20] sm:$0xff]
  %v26 = vld [vmem:[%s1 + $0x28] sm:$0xff]
  %v27 = vld [vmem:[%s1 + $0x30] sm:$0xff]
  %v28 = vld [vmem:[%s1 + $0x38] sm:$0xff]
  %v29 = vld [vmem:[%s1 + $0x40] sm:$0xff]
  %v30 = vld [vmem:[%s1 + $0x48] sm:$0xff]
  %v31 = vld [vmem:[%s1 + $0x50] sm:$0xff]
  %v32 = vld [vmem:[%s1 + $0x58] sm:$0xff]
  %v33 = vld [vmem:[%s1 + $0x60] sm:$0xf]
  %v34 = vld [vmem:[%s2] sm:$0x1]
  %v36 = vlaneseq
  %v37 = vshrl.u32 %v36, 7
  %v38 = vsub.s32 0, %v37
  %v39 = vrot.slane %v34, %v38
  %vm41 = vcmask 818176
  %v43 = vsel %vm41, %v20, 0
  %vm45 = vcmask 1043456
  %v47 = vsel %vm45, %v33, 0
  %49 = vmatprep.subr.mxu0 0.0
  %50 = vmatpush1.msra.mxu0 %v21
  %51 = vmatprep.subr.mxu0 0.0
  %52 = vmatpush1.msra.mxu0 %v22
  %53 = vmatprep.subr.mxu0 0.0
  %54 = vmatpush1.msra.mxu0 %v23
  %55 = vmatprep.subr.mxu0 0.0
  %56 = vmatpush1.msra.mxu0 %v24
  %57 = vmatprep.subr.mxu0 0.0
  %58 = vmatpush1.msra.mxu0 %v25
  %59 = vmatprep.subr.mxu0 0.0
  %60 = vmatpush1.msra.mxu0 %v26
  %61 = vmatprep.subr.mxu0 0.0
  %62 = vmatpush1.msra.mxu0 %v27
  %63 = vmatprep.subr.mxu0 0.0
  %64 = vmatpush1.msra.mxu0 %v28
  %65 = vmatprep.subr.mxu0 0.0
  %66 = vmatpush1.msra.mxu0 %v29
  %67 = vmatprep.subr.mxu0 0.0
  %68 = vmatpush1.msra.mxu0 %v30
  %69 = vmatprep.subr.mxu0 0.0
  %70 = vmatpush1.msra.mxu0 %v31
  %71 = vmatprep.subr.mxu0 0.0
  %72 = vmatpush1.msra.mxu0 %v32
  %73 = vmatprep.subr.mxu0 0.0
  %74 = vmatpush1.msra.mxu0 %v47
  %75 = vmatprep.subr.mxu0 0.0
  %76 = vmatpush1.msra.mxu0 0.0
  %77 = vmatprep.subr.mxu0 0.0
  %78 = vmatpush1.msra.mxu0 0.0
  %79 = vmatprep.subr.mxu0 0.0
  %80 = vmatpush1.msra.mxu0 0.0
  %81 = vmatprep.subr.mxu0 0.0
  %82 = vmatpush1.msra.mxu0 0.0
  %83 = vmatprep.subr.mxu0 0.0
  %84 = vmatpush1.msra.mxu0 0.0
  %85 = vmatprep.subr.mxu0 0.0
  %86 = vmatpush1.msra.mxu0 0.0
  %87 = vmatprep.subr.mxu0 0.0
  %88 = vmatpush1.msra.mxu0 0.0
  %89 = vmatprep.subr.mxu0 0.0
  %90 = vmatpush1.msra.mxu0 0.0
  %91 = vmatprep.subr.mxu0 0.0
  %92 = vmatpush1.msra.mxu0 0.0
  %93 = vmatprep.subr.mxu0 0.0
  %94 = vmatpush1.msra.mxu0 0.0
  %95 = vmatprep.subr.mxu0 0.0
  %96 = vmatpush1.msra.mxu0 0.0
  %97 = vmatprep.subr.mxu0 0.0
  %98 = vmatpush1.msra.mxu0 0.0
  %99 = vmatprep.subr.mxu0 0.0
  %100 = vmatpush1.msra.mxu0 0.0
  %101 = vmatprep.subr.mxu0 0.0
  %102 = vmatpush1.msra.mxu0 0.0
  %103 = vmatprep.subr.mxu0 0.0
  %104 = vmatpush1.msra.mxu0 0.0
  %105 = vmatprep.subr.mxu0 0.0
  %106 = vmatpush1.msra.mxu0 0.0
  %107 = vmatprep.subr.mxu0 0.0
  %108 = vmatpush1.msra.mxu0 0.0
  %109 = vmatprep.subr.mxu0 0.0
  %110 = vmatpush1.msra.mxu0 0.0
  %111 = vmatprep.subr.mxu0 0.0
  %112 = vmatpush1.msra.mxu0 0.0
  %113 = vmatprep.mubr.f32.mxu0 0.0
  %114 = vmatmul.mubr.f32.gmra.mrb[0].mxu0 %v43
  %v115 = vpop.f32.mrb[0].mxu0
  %v116 = vadd.f32 %v39, %v115
  %v117 = vpop.f32.mrb[0].mxu0
  %118 = vdwg.mxu0
  %v119 = vmax.f32 %v116, 0.0
  %v120 = vld [vmem:[%s3] sm:$0xff]
  %v121 = vld [vmem:[%s3 + $0x8] sm:$0xff]
  %v122 = vld [vmem:[%s3 + $0x10] sm:$0xff]
  %v123 = vld [vmem:[%s3 + $0x18] sm:$0xff]
  %v124 = vld [vmem:[%s3 + $0x20] sm:$0xff]
  %v125 = vld [vmem:[%s3 + $0x28] sm:$0xff]
  %v126 = vld [vmem:[%s3 + $0x30] sm:$0xff]
  %v127 = vld [vmem:[%s3 + $0x38] sm:$0xff]
  %v128 = vld [vmem:[%s3 + $0x40] sm:$0xff]
  %v129 = vld [vmem:[%s3 + $0x48] sm:$0xff]
  %v130 = vld [vmem:[%s3 + $0x50] sm:$0xff]
  %v131 = vld [vmem:[%s3 + $0x58] sm:$0xff]
  %v132 = vld [vmem:[%s3 + $0x60] sm:$0xff]
  %v133 = vld [vmem:[%s3 + $0x68] sm:$0xff]
  %v134 = vld [vmem:[%s3 + $0x70] sm:$0xff]
  %v135 = vld [vmem:[%s3 + $0x78] sm:$0xff]
  %v136 = vld [vmem:[%s4] sm:$0x1]
  %v138 = vlaneseq
  %v139 = vshrl.u32 %v138, 7
  %v140 = vsub.s32 0, %v139
  %v141 = vrot.slane %v136, %v140
  %143 = vmatprep.subr.mxu0 0.0
  %144 = vmatpush1.msra.mxu0 %v120
  %145 = vmatprep.subr.mxu0 0.0
  %146 = vmatpush1.msra.mxu0 %v121
  %147 = vmatprep.subr.mxu0 0.0
  %148 = vmatpush1.msra.mxu0 %v122
  %149 = vmatprep.subr.mxu0 0.0
  %150 = vmatpush1.msra.mxu0 %v123
  %151 = vmatprep.subr.mxu0 0.0
  %152 = vmatpush1.msra.mxu0 %v124
  %153 = vmatprep.subr.mxu0 0.0
  %154 = vmatpush1.msra.mxu0 %v125
  %155 = vmatprep.subr.mxu0 0.0
  %156 = vmatpush1.msra.mxu0 %v126
  %157 = vmatprep.subr.mxu0 0.0
  %158 = vmatpush1.msra.mxu0 %v127
  %159 = vmatprep.subr.mxu0 0.0
  %160 = vmatpush1.msra.mxu0 %v128
  %161 = vmatprep.subr.mxu0 0.0
  %162 = vmatpush1.msra.mxu0 %v129
  %163 = vmatprep.subr.mxu0 0.0
  %164 = vmatpush1.msra.mxu0 %v130
  %165 = vmatprep.subr.mxu0 0.0
  %166 = vmatpush1.msra.mxu0 %v131
  %167 = vmatprep.subr.mxu0 0.0
  %168 = vmatpush1.msra.mxu0 %v132
  %169 = vmatprep.subr.mxu0 0.0
  %170 = vmatpush1.msra.mxu0 %v133
  %171 = vmatprep.subr.mxu0 0.0
  %172 = vmatpush1.msra.mxu0 %v134
  %173 = vmatprep.subr.mxu0 0.0
  %174 = vmatpush1.msra.mxu0 %v135
  %175 = vmatprep.subr.mxu0 0.0
  %176 = vmatpush1.msra.mxu0 0.0
  %177 = vmatprep.subr.mxu0 0.0
  %178 = vmatpush1.msra.mxu0 0.0
  %179 = vmatprep.subr.mxu0 0.0
  %180 = vmatpush1.msra.mxu0 0.0
  %181 = vmatprep.subr.mxu0 0.0
  %182 = vmatpush1.msra.mxu0 0.0
  %183 = vmatprep.subr.mxu0 0.0
  %184 = vmatpush1.msra.mxu0 0.0
  %185 = vmatprep.subr.mxu0 0.0
  %186 = vmatpush1.msra.mxu0 0.0
  %187 = vmatprep.subr.mxu0 0.0
  %188 = vmatpush1.msra.mxu0 0.0
  %189 = vmatprep.subr.mxu0 0.0
  %190 = vmatpush1.msra.mxu0 0.0
  %191 = vmatprep.subr.mxu0 0.0
  %192 = vmatpush1.msra.mxu0 0.0
  %193 = vmatprep.subr.mxu0 0.0
  %194 = vmatpush1.msra.mxu0 0.0
  %195 = vmatprep.subr.mxu0 0.0
  %196 = vmatpush1.msra.mxu0 0.0
  %197 = vmatprep.subr.mxu0 0.0
  %198 = vmatpush1.msra.mxu0 0.0
  %199 = vmatprep.subr.mxu0 0.0
  %200 = vmatpush1.msra.mxu0 0.0
  %201 = vmatprep.subr.mxu0 0.0
  %202 = vmatpush1.msra.mxu0 0.0
  %203 = vmatprep.subr.mxu0 0.0
  %204 = vmatpush1.msra.mxu0 0.0
  %205 = vmatprep.subr.mxu0 0.0
  %206 = vmatpush1.msra.mxu0 0.0
  %207 = vmatprep.mubr.f32.mxu0 0.0
  %208 = vmatmul.mubr.f32.gmra.mrb[0].mxu0 %v119
  %v209 = vpop.f32.mrb[0].mxu0
  %v210 = vadd.f32 %v141, %v209
  %v211 = vpop.f32.mrb[0].mxu0
  %212 = vdwg.mxu0
  %v213 = vxor.u32 %v210, 2147483648
  %v214 = vmul.f32 %v213, 1.442695
  %v215 = vpow.pop %v214
  %v216 = vadd.f32 %v215, 1.0
  %v217 = vrcp.pop %v216
  %v218 = vmul.f32 1.0, %v217
  %vm219 = vcmask 23552
  %220 = vst.msk [vmem:[%s5] sm:$0xff] %vm219, %v218
  // Predicated region
  $region22: #{test_image_forward.1} parent=0 // pred_check
    _
  $region23: #{test_image_forward.1} parent=0 // pred_check_branch
    %222 = sbr.rel (0) target = $region25
  $region24: #{test_image_forward.1} parent=0 // pred_region
    _
  $region25: #{test_image_forward.1} parent=0 // pred_fallthru
    _
  // Predicated region
  $region26: #{test_image_forward.1} parent=0 // pred_check
    _
  $region27: #{test_image_forward.1} parent=0 // pred_check_branch
    %224 = sbr.rel (0) target = $region29
  $region28: #{test_image_forward.1} parent=0 // pred_region
    _
  $region29: #{test_image_forward.1} parent=0 // pred_fallthru
    _

</llo_original>
